<compile_context>
chip_gen: v7x
topology: tpu7x:2x2x1
jax: 0.10.0
libtpu: 0.0.40
codegen_flags: <defaults>
</compile_context>

<pallas_src>
import functools

import jax
import jax.numpy as jnp
from jax.experimental import pallas as pl
from jax.experimental.pallas import tpu as pltpu


def _round_up(x, m):
    return ((x + m - 1) // m) * m


def qnetwork_kernel(x_ref, p1_ref, p2_ref, p3_ref, out_ref):
    # x: (TB, 8) = [state | action]
    x = x_ref[...]

    # Layer 1 (fused fc_s + fc_a): block-diagonal W1.
    w1 = p1_ref[0:8, :]            # (8, 128)
    b1 = p1_ref[8:9, :]            # (1, 128) = [bs | ba]
    h = jnp.dot(x, w1, preferred_element_type=jnp.float32)
    h = jnp.maximum(h + b1, 0.0)   # (TB, 128) = [h1 | h2]

    # Layer 2 (fc_q on the implicit concat).
    wq = p2_ref[0:128, :]          # (128, 32)
    bq = p2_ref[128:129, :]        # (1, 32)
    q = jnp.dot(h, wq, preferred_element_type=jnp.float32)
    q = jnp.maximum(q + bq, 0.0)   # (TB, 32)

    # Output layer (fc_out).
    wo = p3_ref[0:32, :]           # (32, 1)
    bo = p3_ref[32:33, :]          # (1, 1)
    out_ref[...] = jnp.dot(q, wo, preferred_element_type=jnp.float32) + bo


def pack_params(params):
    """Pack the 8 per-layer tensors into 3 tile-aligned f32 slabs."""
    ws, bs, wa, ba, wq, bq, wo, bo = params

    # p1: rows 0:8 = block-diagonal W1, row 8 = [bs | ba], rows 9:16 = 0.
    p1 = jnp.zeros((16, 128), jnp.float32)
    p1 = p1.at[0:7, 0:64].set(ws)
    p1 = p1.at[7:8, 64:128].set(wa)
    p1 = p1.at[8, 0:64].set(bs)
    p1 = p1.at[8, 64:128].set(ba)

    # p2: rows 0:128 = Wq, row 128 = bq, rows 129:136 = 0.
    p2 = jnp.zeros((136, 32), jnp.float32)
    p2 = p2.at[0:128, :].set(wq)
    p2 = p2.at[128, :].set(bq)

    # p3: rows 0:32 = Wo, row 32 = bo, rows 33:40 = 0.
    p3 = jnp.zeros((40, 1), jnp.float32)
    p3 = p3.at[0:32, :].set(wo)
    p3 = p3.at[32, 0].set(bo[0])

    return p1, p2, p3


@functools.partial(jax.jit, static_argnames=("block_b",))
def qnetwork_forward(state, action, packed, *, block_b=1024):
    """state: (B, 7) f32, action: (B, 1) f32 -> (B, 1) f32."""
    p1, p2, p3 = packed
    B = state.shape[0]

    # Pack [state | action] into one lane-contiguous (B, 8) input.
    x = jnp.concatenate([state, action], axis=-1)

    # Batch tiling: TB up to block_b, padded batch is a multiple of TB (>= 8).
    tb = min(block_b, max(8, _round_up(B, 8)))
    bp = _round_up(B, tb)
    if bp != B:
        x = jnp.pad(x, ((0, bp - B), (0, 0)))

    grid = (bp // tb,)
    flops = 2 * bp * (8 * 128 + 128 * 32 + 32 * 1)
    bytes_accessed = bp * 8 * 4 + bp * 1 * 4 + 4 * (p1.size + p2.size + p3.size)

    out = pl.pallas_call(
        qnetwork_kernel,
        out_shape=jax.ShapeDtypeStruct((bp, 1), jnp.float32),
        grid_spec=pltpu.PrefetchScalarGridSpec(
            num_scalar_prefetch=0,
            grid=grid,
            in_specs=[
                # Batch-tiled input.
                pl.BlockSpec((tb, 8), lambda i: (i, 0)),
                # Weight slabs: same block every step -> VMEM-resident.
                pl.BlockSpec((16, 128), lambda i: (0, 0)),
                pl.BlockSpec((136, 32), lambda i: (0, 0)),
                pl.BlockSpec((40, 1), lambda i: (0, 0)),
            ],
            out_specs=pl.BlockSpec((tb, 1), lambda i: (i, 0)),
        ),
        compiler_params=pltpu.CompilerParams(
            dimension_semantics=("parallel",)),
        cost_estimate=pl.CostEstimate(
            flops=flops, transcendentals=0, bytes_accessed=bytes_accessed),
    )(x, p1, p2, p3)

    return out[:B]


def init_params(key):
    """PyTorch nn.Linear default init (U(-1/sqrt(in), 1/sqrt(in))).
    Weights returned as (in_features, out_features)."""
    def linear(key, fan_in, fan_out):
        kw, kb = jax.random.split(key)
        bound = 1.0 / (fan_in ** 0.5)
        w = jax.random.uniform(kw, (fan_in, fan_out), jnp.float32, -bound, bound)
        b = jax.random.uniform(kb, (fan_out,), jnp.float32, -bound, bound)
        return w, b

    k1, k2, k3, k4 = jax.random.split(key, 4)
    ws, bs = linear(k1, 7, 64)     # fc_s
    wa, ba = linear(k2, 1, 64)     # fc_a
    wq, bq = linear(k3, 128, 32)   # fc_q
    wo, bo = linear(k4, 32, 1)     # fc_out
    return (ws, bs, wa, ba, wq, bq, wo, bo)


def qnetwork_reference(state, action, params):
    """Plain-JAX reference mirroring the PyTorch forward."""
    ws, bs, wa, ba, wq, bq, wo, bo = params
    h1 = jax.nn.relu(state @ ws + bs)
    h2 = jax.nn.relu(action @ wa + ba)
    cat = jnp.concatenate([h1, h2], axis=-1)
    q = jax.nn.relu(cat @ wq + bq)
    return q @ wo + bo


if __name__ == "__main__":
    key = jax.random.PRNGKey(0)
    kp, ks, ka = jax.random.split(key, 3)

    params = init_params(kp)
    packed = pack_params(params)

    # Small deterministic check.
    B = 8
    state = jax.random.normal(ks, (B, 7), jnp.float32)
    action = jax.random.normal(ka, (B, 1), jnp.float32)

    out = qnetwork_forward(state, action, packed)
    out = jax.block_until_ready(out)
    ref = qnetwork_reference(state, action, params)
    assert out.shape == (B, 1)
    assert jnp.allclose(out, ref, atol=1e-4, rtol=1e-4), "mismatch vs reference (B=8)"

    # Non-multiple-of-8 batch to exercise the padding / tail path.
    B2 = 300
    ks2, ka2 = jax.random.split(jax.random.PRNGKey(1))
    state2 = jax.random.normal(ks2, (B2, 7), jnp.float32)
    action2 = jax.random.normal(ka2, (B2, 1), jnp.float32)
    out2 = jax.block_until_ready(qnetwork_forward(state2, action2, packed))
    ref2 = qnetwork_reference(state2, action2, params)
    assert out2.shape == (B2, 1)
    assert jnp.allclose(out2, ref2, atol=1e-4, rtol=1e-4), "mismatch vs reference (B=300)"

    print("KERNEL_OK")
</pallas_src>

<mosaic_0001>
module attributes {stable_mosaic.version = 11 : i64} {
  func.func @qnetwork_kernel(%arg0: i32, %arg1: memref<8x8xf32, #tpu.memory_space<vmem>>, %arg2: memref<16x128xf32, #tpu.memory_space<vmem>>, %arg3: memref<136x32xf32, #tpu.memory_space<vmem>>, %arg4: memref<40x1xf32, #tpu.memory_space<vmem>>, %arg5: memref<8x1xf32, #tpu.memory_space<vmem>>) attributes {dimension_semantics = [#tpu.dimension_semantics<parallel>], iteration_bounds = array<i64: 1>, scalar_prefetch = 0 : i64, scratch_operands = 0 : i64, tpu.core_type = #tpu.core_type<tc>, window_params = [{transform_indices = @transform_0, window_bounds = array<i64: 8, 8>}, {pipeline_mode = #tpu.pipeline_mode<synchronous>, transform_indices = @transform_1, window_bounds = array<i64: 16, 128>}, {pipeline_mode = #tpu.pipeline_mode<synchronous>, transform_indices = @transform_2, window_bounds = array<i64: 136, 32>}, {pipeline_mode = #tpu.pipeline_mode<synchronous>, transform_indices = @transform_3, window_bounds = array<i64: 40, 1>}, {transform_indices = @transform_4, window_bounds = array<i64: 8, 1>}]} {
    %c0 = arith.constant 0 : index
    %c0_0 = arith.constant 0 : index
    %0 = vector.load %arg1[%c0, %c0_0] : memref<8x8xf32, #tpu.memory_space<vmem>>, vector<8x8xf32>
    %c0_1 = arith.constant 0 : index
    %c0_2 = arith.constant 0 : index
    %1 = vector.load %arg2[%c0_1, %c0_2] : memref<16x128xf32, #tpu.memory_space<vmem>>, vector<8x128xf32>
    %c8 = arith.constant 8 : index
    %c0_3 = arith.constant 0 : index
    %2 = vector.load %arg2[%c8, %c0_3] : memref<16x128xf32, #tpu.memory_space<vmem>>, vector<1x128xf32>
    %cst = arith.constant dense<0.000000e+00> : vector<8x128xf32>
    %3 = tpu.matmul %0, %1, %cst {dimension_numbers = #tpu.dot_dimension_numbers<[1], [0], [0], [1], [0, 0, 1, 1], [], []>} : vector<8x8xf32>, vector<8x128xf32>, vector<8x128xf32> -> vector<8x128xf32>
    %4 = vector.broadcast %2 : vector<1x128xf32> to vector<8x128xf32>
    %5 = arith.addf %3, %4 : vector<8x128xf32>
    %cst_4 = arith.constant 0.000000e+00 : f32
    %6 = vector.broadcast %cst_4 : f32 to vector<8x128xf32>
    %7 = arith.maximumf %5, %6 : vector<8x128xf32>
    %c0_5 = arith.constant 0 : index
    %c0_6 = arith.constant 0 : index
    %8 = vector.load %arg3[%c0_5, %c0_6] : memref<136x32xf32, #tpu.memory_space<vmem>>, vector<128x32xf32>
    %c128 = arith.constant 128 : index
    %c0_7 = arith.constant 0 : index
    %9 = vector.load %arg3[%c128, %c0_7] : memref<136x32xf32, #tpu.memory_space<vmem>>, vector<1x32xf32>
    %cst_8 = arith.constant dense<0.000000e+00> : vector<8x32xf32>
    %10 = tpu.matmul %7, %8, %cst_8 {dimension_numbers = #tpu.dot_dimension_numbers<[1], [0], [0], [1], [0, 0, 1, 1], [], []>} : vector<8x128xf32>, vector<128x32xf32>, vector<8x32xf32> -> vector<8x32xf32>
    %11 = vector.broadcast %9 : vector<1x32xf32> to vector<8x32xf32>
    %12 = arith.addf %10, %11 : vector<8x32xf32>
    %cst_9 = arith.constant 0.000000e+00 : f32
    %13 = vector.broadcast %cst_9 : f32 to vector<8x32xf32>
    %14 = arith.maximumf %12, %13 : vector<8x32xf32>
    %c0_10 = arith.constant 0 : index
    %c0_11 = arith.constant 0 : index
    %15 = vector.load %arg4[%c0_10, %c0_11] : memref<40x1xf32, #tpu.memory_space<vmem>>, vector<32x1xf32>
    %c32 = arith.constant 32 : index
    %c0_12 = arith.constant 0 : index
    %16 = vector.load %arg4[%c32, %c0_12] : memref<40x1xf32, #tpu.memory_space<vmem>>, vector<1x1xf32>
    %cst_13 = arith.constant dense<0.000000e+00> : vector<8x1xf32>
    %17 = tpu.matmul %14, %15, %cst_13 {dimension_numbers = #tpu.dot_dimension_numbers<[1], [0], [0], [1], [0, 0, 1, 1], [], []>} : vector<8x32xf32>, vector<32x1xf32>, vector<8x1xf32> -> vector<8x1xf32>
    %18 = vector.broadcast %16 : vector<1x1xf32> to vector<8x1xf32>
    %19 = arith.addf %17, %18 : vector<8x1xf32>
    %c0_14 = arith.constant 0 : index
    %c0_15 = arith.constant 0 : index
    %20 = vector.load %arg5[%c0_14, %c0_15] : memref<8x1xf32, #tpu.memory_space<vmem>>, vector<8x1xf32>
    tpu.vector_store %arg5[%c0_14, %c0_15], %19 {strides = array<i32>} : memref<8x1xf32, #tpu.memory_space<vmem>>, vector<8x1xf32>,
    return
  }
  func.func @transform_0(%arg0: i32) -> (i32, i32) {
    %c0_i32 = arith.constant 0 : i32
    %c0_i32_0 = arith.constant 0 : i32
    return %arg0, %c0_i32 : i32, i32
  }
  func.func @transform_1(%arg0: i32) -> (i32, i32) {
    %c0_i32 = arith.constant 0 : i32
    %c0_i32_0 = arith.constant 0 : i32
    %c0_i32_1 = arith.constant 0 : i32
    return %c0_i32, %c0_i32_0 : i32, i32
  }
  func.func @transform_2(%arg0: i32) -> (i32, i32) {
    %c0_i32 = arith.constant 0 : i32
    %c0_i32_0 = arith.constant 0 : i32
    %c0_i32_1 = arith.constant 0 : i32
    return %c0_i32, %c0_i32_0 : i32, i32
  }
  func.func @transform_3(%arg0: i32) -> (i32, i32) {
    %c0_i32 = arith.constant 0 : i32
    %c0_i32_0 = arith.constant 0 : i32
    %c0_i32_1 = arith.constant 0 : i32
    return %c0_i32, %c0_i32_0 : i32, i32
  }
  func.func @transform_4(%arg0: i32) -> (i32, i32) {
    %c0_i32 = arith.constant 0 : i32
    %c0_i32_0 = arith.constant 0 : i32
    return %arg0, %c0_i32 : i32, i32
  }
}

</mosaic_0001>

<llo_original>
// kernel: qnetwork_forward.1
$region0: #{qnetwork_forward.1}
  #allocation0 [shape = 'u32[]', space=smem, size = 0x4, offset = 0x4, fixed_abs, tag = 'smem constant byte address 0x4 - core index']
  #allocation1 [shape = 'u32[144,128]{1,0:T(1,128)}', space=vmem, size = 0x12000, scoped, tag = 'internal scratch']
  %s0 = inlined_call_operand.vmem [shape: f32[8,8], index: 0, kind: input, shape index: {}]
  %s1 = inlined_call_operand.vmem [shape: f32[16,128], index: 1, kind: input, shape index: {}]
  %s2 = inlined_call_operand.vmem [shape: f32[136,32], index: 2, kind: input, shape index: {}]
  %s3 = inlined_call_operand.vmem [shape: f32[40,1], index: 3, kind: input, shape index: {}]
  %s4 = inlined_call_operand.vmem [shape: f32[8,1], index: 4, kind: output, shape index: {}]
  %s5 = sld [smem:[#allocation0]]
  $region26: #{qnetwork_forward.1} parent=0
    _
  %s7 = ssub.s32 1, %s5
  %s8 = scalar_select 0, %s7, %s5
  // Predicated region
  $region2: #{qnetwork_forward.1} parent=0 // pred_check
    _
  $region3: #{qnetwork_forward.1} parent=0 // pred_check_branch
    %10 = sbr.rel (0) target = $region5
  $region4: #{qnetwork_forward.1} parent=0 // pred_region
    _
  $region5: #{qnetwork_forward.1} parent=0 // pred_fallthru
    _
  // Predicated region
  $region6: #{qnetwork_forward.1} parent=0 // pred_check
    _
  $region7: #{qnetwork_forward.1} parent=0 // pred_check_branch
    %12 = sbr.rel (0) target = $region9
  $region8: #{qnetwork_forward.1} parent=0 // pred_region
    _
  $region9: #{qnetwork_forward.1} parent=0 // pred_fallthru
    _
  // Predicated region
  $region10: #{qnetwork_forward.1} parent=0 // pred_check
    _
  $region11: #{qnetwork_forward.1} parent=0 // pred_check_branch
    %14 = sbr.rel (0) target = $region13
  $region12: #{qnetwork_forward.1} parent=0 // pred_region
    _
  $region13: #{qnetwork_forward.1} parent=0 // pred_fallthru
    _
  // Predicated region
  $region14: #{qnetwork_forward.1} parent=0 // pred_check
    _
  $region15: #{qnetwork_forward.1} parent=0 // pred_check_branch
    %16 = sbr.rel (0) target = $region17
  $region16: #{qnetwork_forward.1} parent=0 // pred_region
    _
  $region17: #{qnetwork_forward.1} parent=0 // pred_fallthru
    _
  %v17 = vld [vmem:[%s0] sm:$0xff]
  %v18 = vld [vmem:[%s1] sm:$0xff]
  %v19 = vld [vmem:[%s1 + $0x8] sm:$0x1]
  %v20 = vlaneseq
  %v21 = vshrl.u32 %v20, 7
  %v22 = vsub.s32 0, %v21
  %v23 = vrot.slane %v19, %v22
  %vm24 = vcmask 64512
  %v26 = vsel %vm24, %v17, 0
  %28 = vmatprep.subr.mxu0 0.0
  %29 = vmatpush1.msra.mxu0 %v18
  %30 = vmatprep.subr.mxu0 0.0
  %31 = vmatpush1.msra.mxu0 0.0
  %32 = vmatprep.subr.mxu0 0.0
  %33 = vmatpush1.msra.mxu0 0.0
  %34 = vmatprep.subr.mxu0 0.0
  %35 = vmatpush1.msra.mxu0 0.0
  %36 = vmatprep.subr.mxu0 0.0
  %37 = vmatpush1.msra.mxu0 0.0
  %38 = vmatprep.subr.mxu0 0.0
  %39 = vmatpush1.msra.mxu0 0.0
  %40 = vmatprep.subr.mxu0 0.0
  %41 = vmatpush1.msra.mxu0 0.0
  %42 = vmatprep.subr.mxu0 0.0
  %43 = vmatpush1.msra.mxu0 0.0
  %44 = vmatprep.subr.mxu0 0.0
  %45 = vmatpush1.msra.mxu0 0.0
  %46 = vmatprep.subr.mxu0 0.0
  %47 = vmatpush1.msra.mxu0 0.0
  %48 = vmatprep.subr.mxu0 0.0
  %49 = vmatpush1.msra.mxu0 0.0
  %50 = vmatprep.subr.mxu0 0.0
  %51 = vmatpush1.msra.mxu0 0.0
  %52 = vmatprep.subr.mxu0 0.0
  %53 = vmatpush1.msra.mxu0 0.0
  %54 = vmatprep.subr.mxu0 0.0
  %55 = vmatpush1.msra.mxu0 0.0
  %56 = vmatprep.subr.mxu0 0.0
  %57 = vmatpush1.msra.mxu0 0.0
  %58 = vmatprep.subr.mxu0 0.0
  %59 = vmatpush1.msra.mxu0 0.0
  %60 = vmatprep.subr.mxu0 0.0
  %61 = vmatpush1.msra.mxu0 0.0
  %62 = vmatprep.subr.mxu0 0.0
  %63 = vmatpush1.msra.mxu0 0.0
  %64 = vmatprep.subr.mxu0 0.0
  %65 = vmatpush1.msra.mxu0 0.0
  %66 = vmatprep.subr.mxu0 0.0
  %67 = vmatpush1.msra.mxu0 0.0
  %68 = vmatprep.subr.mxu0 0.0
  %69 = vmatpush1.msra.mxu0 0.0
  %70 = vmatprep.subr.mxu0 0.0
  %71 = vmatpush1.msra.mxu0 0.0
  %72 = vmatprep.subr.mxu0 0.0
  %73 = vmatpush1.msra.mxu0 0.0
  %74 = vmatprep.subr.mxu0 0.0
  %75 = vmatpush1.msra.mxu0 0.0
  %76 = vmatprep.subr.mxu0 0.0
  %77 = vmatpush1.msra.mxu0 0.0
  %78 = vmatprep.subr.mxu0 0.0
  %79 = vmatpush1.msra.mxu0 0.0
  %80 = vmatprep.subr.mxu0 0.0
  %81 = vmatpush1.msra.mxu0 0.0
  %82 = vmatprep.subr.mxu0 0.0
  %83 = vmatpush1.msra.mxu0 0.0
  %84 = vmatprep.subr.mxu0 0.0
  %85 = vmatpush1.msra.mxu0 0.0
  %86 = vmatprep.subr.mxu0 0.0
  %87 = vmatpush1.msra.mxu0 0.0
  %88 = vmatprep.subr.mxu0 0.0
  %89 = vmatpush1.msra.mxu0 0.0
  %90 = vmatprep.subr.mxu0 0.0
  %91 = vmatpush1.msra.mxu0 0.0
  %92 = vmatprep.mubr.f32.mxu0 0.0
  %93 = vmatmul.mubr.f32.gmra.mrb[0].mxu0 %v26
  %v94 = vpop.f32.mrb[0].mxu0
  %v95 = vadd.f32 %v23, %v94
  %v96 = vpop.f32.mrb[0].mxu0
  %97 = vdwg.mxu0
  %v98 = vmax.f32 %v95, 0.0
  %v99 = vld [vmem:[%s2] sm:$0xff]
  %v100 = vld [vmem:[%s2 + $0x8] sm:$0xff]
  %v101 = vld [vmem:[%s2 + $0x10] sm:$0xff]
  %v102 = vld [vmem:[%s2 + $0x18] sm:$0xff]
  %v103 = vld [vmem:[%s2 + $0x20] sm:$0xff]
  %v104 = vld [vmem:[%s2 + $0x28] sm:$0xff]
  %v105 = vld [vmem:[%s2 + $0x30] sm:$0xff]
  %v106 = vld [vmem:[%s2 + $0x38] sm:$0xff]
  %v107 = vld [vmem:[%s2 + $0x40] sm:$0xff]
  %v108 = vld [vmem:[%s2 + $0x48] sm:$0xff]
  %v109 = vld [vmem:[%s2 + $0x50] sm:$0xff]
  %v110 = vld [vmem:[%s2 + $0x58] sm:$0xff]
  %v111 = vld [vmem:[%s2 + $0x60] sm:$0xff]
  %v112 = vld [vmem:[%s2 + $0x68] sm:$0xff]
  %v113 = vld [vmem:[%s2 + $0x70] sm:$0xff]
  %v114 = vld [vmem:[%s2 + $0x78] sm:$0xff]
  %v115 = vld [vmem:[%s2 + $0x80] sm:$0x1]
  %v116 = vlaneseq
  %v117 = vshrl.u32 %v116, 7
  %v118 = vsub.s32 0, %v117
  %v119 = vrot.slane %v115, %v118
  %120 = vmatprep.subr.mxu0 0.0
  %121 = vmatpush1.msra.mxu0 %v99
  %122 = vmatprep.subr.mxu0 0.0
  %123 = vmatpush1.msra.mxu0 %v100
  %124 = vmatprep.subr.mxu0 0.0
  %125 = vmatpush1.msra.mxu0 %v101
  %126 = vmatprep.subr.mxu0 0.0
  %127 = vmatpush1.msra.mxu0 %v102
  %128 = vmatprep.subr.mxu0 0.0
  %129 = vmatpush1.msra.mxu0 %v103
  %130 = vmatprep.subr.mxu0 0.0
  %131 = vmatpush1.msra.mxu0 %v104
  %132 = vmatprep.subr.mxu0 0.0
  %133 = vmatpush1.msra.mxu0 %v105
  %134 = vmatprep.subr.mxu0 0.0
  %135 = vmatpush1.msra.mxu0 %v106
  %136 = vmatprep.subr.mxu0 0.0
  %137 = vmatpush1.msra.mxu0 %v107
  %138 = vmatprep.subr.mxu0 0.0
  %139 = vmatpush1.msra.mxu0 %v108
  %140 = vmatprep.subr.mxu0 0.0
  %141 = vmatpush1.msra.mxu0 %v109
  %142 = vmatprep.subr.mxu0 0.0
  %143 = vmatpush1.msra.mxu0 %v110
  %144 = vmatprep.subr.mxu0 0.0
  %145 = vmatpush1.msra.mxu0 %v111
  %146 = vmatprep.subr.mxu0 0.0
  %147 = vmatpush1.msra.mxu0 %v112
  %148 = vmatprep.subr.mxu0 0.0
  %149 = vmatpush1.msra.mxu0 %v113
  %150 = vmatprep.subr.mxu0 0.0
  %151 = vmatpush1.msra.mxu0 %v114
  %152 = vmatprep.subr.mxu0 0.0
  %153 = vmatpush1.msra.mxu0 0.0
  %154 = vmatprep.subr.mxu0 0.0
  %155 = vmatpush1.msra.mxu0 0.0
  %156 = vmatprep.subr.mxu0 0.0
  %157 = vmatpush1.msra.mxu0 0.0
  %158 = vmatprep.subr.mxu0 0.0
  %159 = vmatpush1.msra.mxu0 0.0
  %160 = vmatprep.subr.mxu0 0.0
  %161 = vmatpush1.msra.mxu0 0.0
  %162 = vmatprep.subr.mxu0 0.0
  %163 = vmatpush1.msra.mxu0 0.0
  %164 = vmatprep.subr.mxu0 0.0
  %165 = vmatpush1.msra.mxu0 0.0
  %166 = vmatprep.subr.mxu0 0.0
  %167 = vmatpush1.msra.mxu0 0.0
  %168 = vmatprep.subr.mxu0 0.0
  %169 = vmatpush1.msra.mxu0 0.0
  %170 = vmatprep.subr.mxu0 0.0
  %171 = vmatpush1.msra.mxu0 0.0
  %172 = vmatprep.subr.mxu0 0.0
  %173 = vmatpush1.msra.mxu0 0.0
  %174 = vmatprep.subr.mxu0 0.0
  %175 = vmatpush1.msra.mxu0 0.0
  %176 = vmatprep.subr.mxu0 0.0
  %177 = vmatpush1.msra.mxu0 0.0
  %178 = vmatprep.subr.mxu0 0.0
  %179 = vmatpush1.msra.mxu0 0.0
  %180 = vmatprep.subr.mxu0 0.0
  %181 = vmatpush1.msra.mxu0 0.0
  %182 = vmatprep.subr.mxu0 0.0
  %183 = vmatpush1.msra.mxu0 0.0
  %184 = vmatprep.mubr.f32.mxu0 0.0
  %185 = vmatmul.mubr.f32.gmra.mrb[0].mxu0 %v98
  %v186 = vpop.f32.mrb[0].mxu0
  %v187 = vadd.f32 %v119, %v186
  %v188 = vpop.f32.mrb[0].mxu0
  %189 = vdwg.mxu0
  %v190 = vmax.f32 %v187, 0.0
  %v191 = vld [vmem:[%s3] sm:$0xff]
  %v192 = vld [vmem:[%s3 + $0x8] sm:$0xff]
  %v193 = vld [vmem:[%s3 + $0x10] sm:$0xff]
  %v194 = vld [vmem:[%s3 + $0x18] sm:$0xff]
  %v195 = vld [vmem:[%s3 + $0x20] sm:$0x1]
  %v196 = vlaneseq
  %v197 = vshrl.u32 %v196, 7
  %v198 = vsub.s32 0, %v197
  %v199 = vrot.slane %v195, %v198
  %vm200 = vcmask 261120
  %v202 = vsel %vm200, %v190, 0
  %204 = vmatprep.subr.mxu0 0.0
  %205 = vmatpush1.msra.mxu0 %v191
  %206 = vmatprep.subr.mxu0 0.0
  %207 = vmatpush1.msra.mxu0 %v192
  %208 = vmatprep.subr.mxu0 0.0
  %209 = vmatpush1.msra.mxu0 %v193
  %210 = vmatprep.subr.mxu0 0.0
  %211 = vmatpush1.msra.mxu0 %v194
  %212 = vmatprep.subr.mxu0 0.0
  %213 = vmatpush1.msra.mxu0 0.0
  %214 = vmatprep.subr.mxu0 0.0
  %215 = vmatpush1.msra.mxu0 0.0
  %216 = vmatprep.subr.mxu0 0.0
  %217 = vmatpush1.msra.mxu0 0.0
  %218 = vmatprep.subr.mxu0 0.0
  %219 = vmatpush1.msra.mxu0 0.0
  %220 = vmatprep.subr.mxu0 0.0
  %221 = vmatpush1.msra.mxu0 0.0
  %222 = vmatprep.subr.mxu0 0.0
  %223 = vmatpush1.msra.mxu0 0.0
  %224 = vmatprep.subr.mxu0 0.0
  %225 = vmatpush1.msra.mxu0 0.0
  %226 = vmatprep.subr.mxu0 0.0
  %227 = vmatpush1.msra.mxu0 0.0
  %228 = vmatprep.subr.mxu0 0.0
  %229 = vmatpush1.msra.mxu0 0.0
  %230 = vmatprep.subr.mxu0 0.0
  %231 = vmatpush1.msra.mxu0 0.0
  %232 = vmatprep.subr.mxu0 0.0
  %233 = vmatpush1.msra.mxu0 0.0
  %234 = vmatprep.subr.mxu0 0.0
  %235 = vmatpush1.msra.mxu0 0.0
  %236 = vmatprep.subr.mxu0 0.0
  %237 = vmatpush1.msra.mxu0 0.0
  %238 = vmatprep.subr.mxu0 0.0
  %239 = vmatpush1.msra.mxu0 0.0
  %240 = vmatprep.subr.mxu0 0.0
  %241 = vmatpush1.msra.mxu0 0.0
  %242 = vmatprep.subr.mxu0 0.0
  %243 = vmatpush1.msra.mxu0 0.0
  %244 = vmatprep.subr.mxu0 0.0
  %245 = vmatpush1.msra.mxu0 0.0
  %246 = vmatprep.subr.mxu0 0.0
  %247 = vmatpush1.msra.mxu0 0.0
  %248 = vmatprep.subr.mxu0 0.0
  %249 = vmatpush1.msra.mxu0 0.0
  %250 = vmatprep.subr.mxu0 0.0
  %251 = vmatpush1.msra.mxu0 0.0
  %252 = vmatprep.subr.mxu0 0.0
  %253 = vmatpush1.msra.mxu0 0.0
  %254 = vmatprep.subr.mxu0 0.0
  %255 = vmatpush1.msra.mxu0 0.0
  %256 = vmatprep.subr.mxu0 0.0
  %257 = vmatpush1.msra.mxu0 0.0
  %258 = vmatprep.subr.mxu0 0.0
  %259 = vmatpush1.msra.mxu0 0.0
  %260 = vmatprep.subr.mxu0 0.0
  %261 = vmatpush1.msra.mxu0 0.0
  %262 = vmatprep.subr.mxu0 0.0
  %263 = vmatpush1.msra.mxu0 0.0
  %264 = vmatprep.subr.mxu0 0.0
  %265 = vmatpush1.msra.mxu0 0.0
  %266 = vmatprep.subr.mxu0 0.0
  %267 = vmatpush1.msra.mxu0 0.0
  %268 = vmatprep.mubr.f32.mxu0 0.0
  %269 = vmatmul.mubr.f32.gmra.mrb[0].mxu0 %v202
  %v270 = vpop.f32.mrb[0].mxu0
  %v271 = vadd.f32 %v199, %v270
  %v272 = vpop.f32.mrb[0].mxu0
  %273 = vdwg.mxu0
  %vm274 = vcmask 7168
  %275 = vst.msk [vmem:[%s4] sm:$0xff] %vm274, %v271
  // Predicated region
  $region18: #{qnetwork_forward.1} parent=0 // pred_check
    _
  $region19: #{qnetwork_forward.1} parent=0 // pred_check_branch
    %277 = sbr.rel (0) target = $region21
  $region20: #{qnetwork_forward.1} parent=0 // pred_region
    _
  $region21: #{qnetwork_forward.1} parent=0 // pred_fallthru
    _
  // Predicated region
  $region22: #{qnetwork_forward.1} parent=0 // pred_check
    _
  $region23: #{qnetwork_forward.1} parent=0 // pred_check_branch
    %279 = sbr.rel (0) target = $region25
  $region24: #{qnetwork_forward.1} parent=0 // pred_region
    _
  $region25: #{qnetwork_forward.1} parent=0 // pred_fallthru
    _

</llo_original>
